<compile_context>
chip_gen: v7x
topology: tpu7x:2x2x1
jax: 0.10.0
libtpu: 0.0.40
codegen_flags: <defaults>
</compile_context>

<pallas_src>
import jax
import jax.numpy as jnp
from jax.experimental import pallas as pl
from jax.experimental.pallas import tpu as pltpu


def _round_up(x, m):
    return ((x + m - 1) // m) * m


def _sublane_multiple(dtype):
    itemsize = jnp.dtype(dtype).itemsize
    return {4: 8, 2: 16, 1: 32}.get(itemsize, 8)


def _vmem_budget_bytes():
    """Per-generation VMEM budget with headroom (v7x: 64 MiB, v5e/v6e: 128 MiB)."""
    try:
        cap = int(pltpu.get_tpu_info().vmem_capacity_bytes)
    except Exception:
        cap = 64 * 1024 * 1024  # conservative fallback = v7x per-TC VMEM
    # Never request the entire physical VMEM; leave room for Mosaic scratch.
    return min((cap * 3) // 4, 112 * 1024 * 1024)


# ---------------------------------------------------------------------------
# Kernels
# ---------------------------------------------------------------------------
def _linear_kernel_f32_out(x_ref, w_ref, b_ref, o_ref):
    # x_ref: (tm, tk)  w_ref: (tk, tn)  b_ref: (1, tn)  o_ref: (tm, tn) f32
    # Output block index is constant along the K grid axis -> o_ref stays
    # resident in VMEM across K; accumulate into it directly (no scratch).
    @pl.when(pl.program_id(2) == 0)
    def _():
        o_ref[...] = jnp.broadcast_to(b_ref[...], o_ref.shape)

    o_ref[...] += jnp.dot(x_ref[...], w_ref[...],
                          preferred_element_type=jnp.float32)


def _linear_kernel_acc(x_ref, w_ref, b_ref, o_ref, acc_ref):
    # Same contraction, but with an f32 scratch accumulator for non-f32 outputs
    # (e.g. bf16): cast once on the last K step.
    k = pl.program_id(2)

    @pl.when(k == 0)
    def _():
        acc_ref[...] = jnp.broadcast_to(b_ref[...], acc_ref.shape)

    acc_ref[...] += jnp.dot(x_ref[...], w_ref[...],
                            preferred_element_type=jnp.float32)

    @pl.when(k == pl.num_programs(2) - 1)
    def _():
        o_ref[...] = acc_ref[...].astype(o_ref.dtype)


# ---------------------------------------------------------------------------
# Wrapper with cached, pre-transposed / pre-padded parameters
# ---------------------------------------------------------------------------
class PallasLinear:
    """Pallas-TPU equivalent of the PyTorch `Linear` forward: y = x @ W^T + b."""

    def __init__(self, weight, bias=None, *, tm=None, tn=None, tk=None):
        out_dim, in_dim = weight.shape
        self.in_dim, self.out_dim = in_dim, out_dim
        dtype = weight.dtype
        itemsize = jnp.dtype(dtype).itemsize
        self._sub = _sublane_multiple(dtype)

        budget = _vmem_budget_bytes()
        self._vmem_limit = budget

        # Default tiles sized to the per-generation VMEM budget.
        if tm is None:
            tm = 512
        if tn is None:
            tn = 2048 if budget >= 80 * 1024 * 1024 else 1024
        if tk is None:
            tk = 1024

        # Clamp to the (alignment-rounded) problem dims (lane axes -> 128).
        tn = min(tn, _round_up(out_dim, 128))
        tk = min(tk, _round_up(in_dim, 128))
        tm = max(self._sub, tm)

        # Shrink if the double-buffered working set would exceed the budget.
        def usage(tm_, tn_, tk_):
            return (2 * tm_ * tk_ * itemsize      # x tiles (double-buffered)
                    + 2 * tk_ * tn_ * itemsize    # W tiles
                    + 2 * tm_ * tn_ * 4           # output tiles (f32 worst case)
                    + tm_ * tn_ * 4               # f32 accumulator (worst case)
                    + 2 * tn_ * 4)                # bias tiles

        while usage(tm, tn, tk) > budget and max(tm, tn, tk) > 128:
            if tn >= max(tm, tk) and tn > 128:
                tn //= 2
            elif tk >= tm and tk > 128:
                tk //= 2
            else:
                tm = max(self._sub, tm // 2)

        self._tm_max = tm
        self.tn, self.tk = tn, tk

        Np = _round_up(out_dim, tn)
        Kp = _round_up(in_dim, tk)
        self.Np, self.Kp = Np, Kp

        # One-time transpose to canonical (K, N) + zero-pad, cached in HBM.
        w_kn = jnp.transpose(weight)                      # (in_dim, out_dim)
        if (Kp, Np) != (in_dim, out_dim):
            w_kn = jnp.pad(w_kn, ((0, Kp - in_dim), (0, Np - out_dim)))
        self.w_kn = w_kn

        if bias is None:
            b = jnp.zeros((out_dim,), dtype=jnp.float32)
        else:
            b = bias.astype(jnp.float32)
        b = b.reshape(1, out_dim)
        if Np != out_dim:
            b = jnp.pad(b, ((0, 0), (0, Np - out_dim)))
        self.b = b  # f32, padded to (1, Np)

    def __call__(self, x):
        in_dim, out_dim = self.in_dim, self.out_dim
        lead_shape = x.shape[:-1]
        x2d = x.reshape(-1, in_dim)
        M = x2d.shape[0]

        tn, tk = self.tn, self.tk
        tm = min(self._tm_max, _round_up(M, self._sub))
        Mp = _round_up(M, tm)
        Np, Kp = self.Np, self.Kp

        # Only x is padded per call (M remainder + K remainder); W/b are cached.
        if (Mp, Kp) != (M, in_dim):
            x2d = jnp.pad(x2d, ((0, Mp - M), (0, Kp - in_dim)))

        gm, gn, gk = Mp // tm, Np // tn, Kp // tk

        # Megacore (v7x): make sure the leading parallel axis has >= 2 blocks.
        if gm == 1 and gn > 1:
            grid = (gn, gm, gk)
            x_map = lambda j, i, k: (i, k)
            w_map = lambda j, i, k: (k, j)
            b_map = lambda j, i, k: (0, j)
            o_map = lambda j, i, k: (i, j)
        else:
            grid = (gm, gn, gk)
            x_map = lambda i, j, k: (i, k)
            w_map = lambda i, j, k: (k, j)
            b_map = lambda i, j, k: (0, j)
            o_map = lambda i, j, k: (i, j)

        out_dtype = x.dtype
        if out_dtype == jnp.float32:
            kernel = _linear_kernel_f32_out
            scratch_shapes = []
        else:
            kernel = _linear_kernel_acc
            scratch_shapes = [pltpu.VMEM((tm, tn), jnp.float32)]

        x_is = jnp.dtype(x2d.dtype).itemsize
        w_is = jnp.dtype(self.w_kn.dtype).itemsize
        o_is = jnp.dtype(out_dtype).itemsize
        cost = pl.CostEstimate(
            flops=2 * Mp * Kp * Np,
            transcendentals=0,
            bytes_accessed=(Mp * Kp * x_is * gn       # x re-streamed per N tile
                            + Kp * Np * w_is * gm     # W re-streamed per M tile
                            + Np * 4 * gm             # bias
                            + Mp * Np * o_is),        # output
        )

        out = pl.pallas_call(
            kernel,
            out_shape=jax.ShapeDtypeStruct((Mp, Np), out_dtype),
            grid_spec=pltpu.PrefetchScalarGridSpec(
                num_scalar_prefetch=0,
                grid=grid,
                in_specs=[
                    pl.BlockSpec((tm, tk), x_map),    # x tile  (M, K)
                    pl.BlockSpec((tk, tn), w_map),    # W tile  (K, N), canonical
                    pl.BlockSpec((1, tn), b_map),     # bias tile
                ],
                out_specs=pl.BlockSpec((tm, tn), o_map),
                scratch_shapes=scratch_shapes,
            ),
            compiler_params=pltpu.CompilerParams(
                dimension_semantics=("parallel", "parallel", "arbitrary"),
                vmem_limit_bytes=self._vmem_limit,
            ),
            cost_estimate=cost,
        )(x2d, self.w_kn, self.b)

        out = out[:M, :out_dim]
        return out.reshape(*lead_shape, out_dim)


def init_linear_params(key, in_dim, out_dim, w_init="linear", dtype=jnp.float32):
    """Mirror the PyTorch module init:
       - weight: xavier_normal_ with gain = calculate_gain(w_init) (1.0 for 'linear')
       - bias:   nn.Linear default uniform(-1/sqrt(in_dim), 1/sqrt(in_dim))
    """
    kw, kb = jax.random.split(key)
    gain = 1.0  # nn.init.calculate_gain('linear') == 1.0
    std = gain * (2.0 / (in_dim + out_dim)) ** 0.5
    weight = std * jax.random.normal(kw, (out_dim, in_dim), dtype=dtype)
    bound = 1.0 / (in_dim ** 0.5)
    bias = jax.random.uniform(kb, (out_dim,), dtype=dtype, minval=-bound, maxval=bound)
    return weight, bias


if __name__ == "__main__":
    key = jax.random.PRNGKey(0)
    k_x, k_p = jax.random.split(key)

    batch, seq, in_dim, out_dim = 2, 8, 32, 64
    x = jax.random.normal(k_x, (batch, seq, in_dim), dtype=jnp.float32)
    weight, bias = init_linear_params(k_p, in_dim, out_dim)

    layer = PallasLinear(weight, bias)   # weight transposed/padded once here
    y = layer(x)
    jax.block_until_ready(y)

    # sanity check vs plain JAX reference
    y_ref = x @ weight.T + bias
    assert y.shape == (batch, seq, out_dim)
    assert jnp.allclose(y, y_ref, atol=1e-5, rtol=1e-5)

    print("KERNEL_OK")
</pallas_src>

<mosaic_0001>
module attributes {stable_mosaic.version = 11 : i64} {
  func.func @_linear_kernel_f32_out(%arg0: i32, %arg1: i32, %arg2: i32, %arg3: memref<16x128xf32, #tpu.memory_space<vmem>>, %arg4: memref<128x128xf32, #tpu.memory_space<vmem>>, %arg5: memref<1x128xf32, #tpu.memory_space<vmem>>, %arg6: memref<16x128xf32, #tpu.memory_space<vmem>>) attributes {dimension_semantics = [#tpu.dimension_semantics<parallel>, #tpu.dimension_semantics<parallel>, #tpu.dimension_semantics<arbitrary>], iteration_bounds = array<i64: 1, 1, 1>, scalar_prefetch = 0 : i64, scratch_operands = 0 : i64, tpu.core_type = #tpu.core_type<tc>, window_params = [{transform_indices = @transform_0, window_bounds = array<i64: 16, 128>}, {transform_indices = @transform_1, window_bounds = array<i64: 128, 128>}, {transform_indices = @transform_2, window_bounds = array<i64: 1, 128>}, {transform_indices = @transform_3, window_bounds = array<i64: 16, 128>}]} {
    %c0_i32 = arith.constant 0 : i32
    %0 = arith.cmpi eq, %arg2, %c0_i32 : i32
    %1 = arith.extui %0 : i1 to i32
    %c0_i32_0 = arith.constant 0 : i32
    %2 = arith.cmpi ne, %1, %c0_i32_0 : i32
    scf.if %2 {
      %c0_8 = arith.constant 0 : index
      %c0_9 = arith.constant 0 : index
      %9 = vector.load %arg5[%c0_8, %c0_9] : memref<1x128xf32, #tpu.memory_space<vmem>>, vector<1x128xf32>
      %10 = vector.shape_cast %9 : vector<1x128xf32> to vector<1x128xf32>
      %11 = vector.broadcast %10 : vector<1x128xf32> to vector<16x128xf32>
      %c0_10 = arith.constant 0 : index
      %c0_11 = arith.constant 0 : index
      %12 = vector.load %arg6[%c0_10, %c0_11] : memref<16x128xf32, #tpu.memory_space<vmem>>, vector<16x128xf32>
      tpu.vector_store %arg6[%c0_10, %c0_11], %11 {strides = array<i32>} : memref<16x128xf32, #tpu.memory_space<vmem>>, vector<16x128xf32>,
    } else {
    }
    %c0 = arith.constant 0 : index
    %c0_1 = arith.constant 0 : index
    %3 = vector.load %arg6[%c0, %c0_1] : memref<16x128xf32, #tpu.memory_space<vmem>>, vector<16x128xf32>
    %c0_2 = arith.constant 0 : index
    %c0_3 = arith.constant 0 : index
    %4 = vector.load %arg3[%c0_2, %c0_3] : memref<16x128xf32, #tpu.memory_space<vmem>>, vector<16x128xf32>
    %c0_4 = arith.constant 0 : index
    %c0_5 = arith.constant 0 : index
    %5 = vector.load %arg4[%c0_4, %c0_5] : memref<128x128xf32, #tpu.memory_space<vmem>>, vector<128x128xf32>
    %cst = arith.constant dense<0.000000e+00> : vector<16x128xf32>
    %6 = tpu.matmul %4, %5, %cst {dimension_numbers = #tpu.dot_dimension_numbers<[1], [0], [0], [1], [0, 0, 1, 1], [], []>} : vector<16x128xf32>, vector<128x128xf32>, vector<16x128xf32> -> vector<16x128xf32>
    %7 = arith.addf %3, %6 : vector<16x128xf32>
    %c0_6 = arith.constant 0 : index
    %c0_7 = arith.constant 0 : index
    %8 = vector.load %arg6[%c0_6, %c0_7] : memref<16x128xf32, #tpu.memory_space<vmem>>, vector<16x128xf32>
    tpu.vector_store %arg6[%c0_6, %c0_7], %7 {strides = array<i32>} : memref<16x128xf32, #tpu.memory_space<vmem>>, vector<16x128xf32>,
    return
  }
  func.func @transform_0(%arg0: i32, %arg1: i32, %arg2: i32) -> (i32, i32) {
    %c0_i32 = arith.constant 0 : i32
    return %arg0, %arg2 : i32, i32
  }
  func.func @transform_1(%arg0: i32, %arg1: i32, %arg2: i32) -> (i32, i32) {
    %c0_i32 = arith.constant 0 : i32
    return %arg2, %arg1 : i32, i32
  }
  func.func @transform_2(%arg0: i32, %arg1: i32, %arg2: i32) -> (i32, i32) {
    %c0_i32 = arith.constant 0 : i32
    %c0_i32_0 = arith.constant 0 : i32
    return %c0_i32, %arg1 : i32, i32
  }
  func.func @transform_3(%arg0: i32, %arg1: i32, %arg2: i32) -> (i32, i32) {
    %c0_i32 = arith.constant 0 : i32
    return %arg0, %arg1 : i32, i32
  }
}

</mosaic_0001>

<llo_original>
// kernel: tpu_custom_call.1
$region0: #{tpu_custom_call.1}
  #allocation0 [shape = 'u32[]', space=smem, size = 0x4, offset = 0x4, fixed_abs, tag = 'smem constant byte address 0x4 - core index']
  #allocation1 [shape = 'u32[144,128]{1,0:T(1,128)}', space=vmem, size = 0x12000, scoped, tag = 'internal scratch']
  %s0 = inlined_call_operand.hbm [shape: f32[16,128], index: 0, kind: input, shape index: {}]
  %s1 = inlined_call_operand.hbm [shape: f32[128,128], index: 1, kind: input, shape index: {}]
  %s2 = inlined_call_operand.vmem [shape: f32[1,128], index: 2, kind: input, shape index: {}]
  %s3 = inlined_call_operand.hbm [shape: f32[16,128], index: 3, kind: output, shape index: {}]
  %s4 = sld [smem:[#allocation0]]
  $region34: #{tpu_custom_call.1} parent=0
    _
  %s6 = ssub.s32 1, %s4
  %s7 = scalar_select 0, %s6, %s4
  $region1: #{tpu_custom_call.1} parent=0
    #allocation2 [shape = 'u8[8192]{0}', space=vmem, size = 0x2000, scoped, tag = 'input window, operand 0, single buffered']
    #allocation3 [shape = 's32[1]{0}', space=sflag, size = 0x4, scoped, tag = 'scoped memory for tpu_custom_call.1']
    #allocation4 [shape = 's32[1]{0}', space=sflag, size = 0x4, scoped, tag = 'scoped memory for tpu_custom_call.1']
    #allocation5 [shape = 'u8[65536]{0}', space=vmem, size = 0x10000, scoped, tag = 'input window, operand 1, single buffered']
    #allocation6 [shape = 's32[1]{0}', space=sflag, size = 0x4, scoped, tag = 'scoped memory for tpu_custom_call.1']
    #allocation7 [shape = 'u8[8192]{0}', space=vmem, size = 0x2000, scoped, tag = 'output window, operand 0, single buffered']
    %8 = vsyncpa [#allocation3], 0
    %9 = vsyncpa [#allocation6], 0
    %10 = vsyncpa [#allocation4], 0
    // Predicated region
    $region2: #{tpu_custom_call.1} parent=1 // pred_check
      _
    $region3: #{tpu_custom_call.1} parent=1 // pred_check_branch
      %12 = sbr.rel (0) target = $region5
    $region4: #{tpu_custom_call.1} parent=1 // pred_region
      %s14 = ssub.s32 256, 256
      %15 = vsyncadd [#allocation3], %s14
      %s16 = sshll.u32 [#allocation2], 4
      %s17 = int_to_ptr.vmem [resolvable:$true] %s16
      %22 = dma.hbm_to_vmem [thread:$0]  %s0, 256, %s17, [#allocation3], 128, 128, 8
    $region5: #{tpu_custom_call.1} parent=1 // pred_fallthru
      _
    // Predicated region
    $region6: #{tpu_custom_call.1} parent=1 // pred_check
      _
    $region7: #{tpu_custom_call.1} parent=1 // pred_check_branch
      %24 = sbr.rel (0) target = $region9
    $region8: #{tpu_custom_call.1} parent=1 // pred_region
      %s26 = ssub.s32 2048, 2048
      %27 = vsyncadd [#allocation6], %s26
      %s28 = sshll.u32 [#allocation5], 4
      %s29 = int_to_ptr.vmem [resolvable:$true] %s28
      %34 = dma.hbm_to_vmem [thread:$0]  %s1, 2048, %s29, [#allocation6], 128, 128, 8
    $region9: #{tpu_custom_call.1} parent=1 // pred_fallthru
      _
    // Predicated region
    $region10: #{tpu_custom_call.1} parent=1 // pred_check
      _
    $region11: #{tpu_custom_call.1} parent=1 // pred_check_branch
      %36 = sbr.rel (0) target = $region13
    $region12: #{tpu_custom_call.1} parent=1 // pred_region
      _
    $region13: #{tpu_custom_call.1} parent=1 // pred_fallthru
      _
    // Predicated region
    $region14: #{tpu_custom_call.1} parent=1 // pred_check
      _
    $region15: #{tpu_custom_call.1} parent=1 // pred_check_branch
      %38 = sbr.rel (0) target = $region17
    $region16: #{tpu_custom_call.1} parent=1 // pred_region
      %39 = dma.done [#allocation3], 256
    $region17: #{tpu_custom_call.1} parent=1 // pred_fallthru
      _
    // Predicated region
    $region18: #{tpu_custom_call.1} parent=1 // pred_check
      _
    $region19: #{tpu_custom_call.1} parent=1 // pred_check_branch
      %41 = sbr.rel (0) target = $region21
    $region20: #{tpu_custom_call.1} parent=1 // pred_region
      %42 = dma.done [#allocation6], 2048
    $region21: #{tpu_custom_call.1} parent=1 // pred_fallthru
      _
    %p43 = scmp.eq.s32.totalorder 0, 0
    // Predicated region
    $region22: #{tpu_custom_call.1} parent=1 // pred_check
      %p44 = pneg %p43
    $region23: #{tpu_custom_call.1} parent=1 // pred_check_branch
      %46 = sbr.rel (%p44) target = $region25
    $region24: #{tpu_custom_call.1} parent=1 // pred_region
      %v47 = vld [vmem:[%s2] sm:$0x1]
      %v49 = vlaneseq
      %v50 = vshrl.u32 %v49, 7
      %v51 = vsub.s32 0, %v50
      %v52 = vrot.slane %v47, %v51
      %54 = vst [vmem:[#allocation7] sm:$0xff] %v52
      %55 = vst [vmem:[#allocation7 + $0x8] sm:$0xff] %v52
    $region25: #{tpu_custom_call.1} parent=1 // pred_fallthru
      _
    %v56 = vld [vmem:[#allocation7] sm:$0xff]
    %v57 = vld [vmem:[#allocation7 + $0x8] sm:$0xff]
    %v58 = vld [vmem:[#allocation2] sm:$0xff]
    %v59 = vld [vmem:[#allocation2 + $0x8] sm:$0xff]
    %v60 = vld [vmem:[#allocation5] sm:$0xff]
    %v61 = vld [vmem:[#allocation5 + $0x8] sm:$0xff]
    %v62 = vld [vmem:[#allocation5 + $0x10] sm:$0xff]
    %v63 = vld [vmem:[#allocation5 + $0x18] sm:$0xff]
    %v64 = vld [vmem:[#allocation5 + $0x20] sm:$0xff]
    %v65 = vld [vmem:[#allocation5 + $0x28] sm:$0xff]
    %v66 = vld [vmem:[#allocation5 + $0x30] sm:$0xff]
    %v67 = vld [vmem:[#allocation5 + $0x38] sm:$0xff]
    %v68 = vld [vmem:[#allocation5 + $0x40] sm:$0xff]
    %v69 = vld [vmem:[#allocation5 + $0x48] sm:$0xff]
    %v70 = vld [vmem:[#allocation5 + $0x50] sm:$0xff]
    %v71 = vld [vmem:[#allocation5 + $0x58] sm:$0xff]
    %v72 = vld [vmem:[#allocation5 + $0x60] sm:$0xff]
    %v73 = vld [vmem:[#allocation5 + $0x68] sm:$0xff]
    %v74 = vld [vmem:[#allocation5 + $0x70] sm:$0xff]
    %v75 = vld [vmem:[#allocation5 + $0x78] sm:$0xff]
    %76 = vmatprep.subr.mxu0 0.0
    %77 = vmatpush1.msra.mxu0 %v60
    %78 = vmatprep.subr.mxu0 0.0
    %79 = vmatpush1.msra.mxu0 %v61
    %80 = vmatprep.subr.mxu0 0.0
    %81 = vmatpush1.msra.mxu0 %v62
    %82 = vmatprep.subr.mxu0 0.0
    %83 = vmatpush1.msra.mxu0 %v63
    %84 = vmatprep.subr.mxu0 0.0
    %85 = vmatpush1.msra.mxu0 %v64
    %86 = vmatprep.subr.mxu0 0.0
    %87 = vmatpush1.msra.mxu0 %v65
    %88 = vmatprep.subr.mxu0 0.0
    %89 = vmatpush1.msra.mxu0 %v66
    %90 = vmatprep.subr.mxu0 0.0
    %91 = vmatpush1.msra.mxu0 %v67
    %92 = vmatprep.subr.mxu0 0.0
    %93 = vmatpush1.msra.mxu0 %v68
    %94 = vmatprep.subr.mxu0 0.0
    %95 = vmatpush1.msra.mxu0 %v69
    %96 = vmatprep.subr.mxu0 0.0
    %97 = vmatpush1.msra.mxu0 %v70
    %98 = vmatprep.subr.mxu0 0.0
    %99 = vmatpush1.msra.mxu0 %v71
    %100 = vmatprep.subr.mxu0 0.0
    %101 = vmatpush1.msra.mxu0 %v72
    %102 = vmatprep.subr.mxu0 0.0
    %103 = vmatpush1.msra.mxu0 %v73
    %104 = vmatprep.subr.mxu0 0.0
    %105 = vmatpush1.msra.mxu0 %v74
    %106 = vmatprep.subr.mxu0 0.0
    %107 = vmatpush1.msra.mxu0 %v75
    %108 = vmatprep.subr.mxu0 0.0
    %109 = vmatpush1.msra.mxu0 0.0
    %110 = vmatprep.subr.mxu0 0.0
    %111 = vmatpush1.msra.mxu0 0.0
    %112 = vmatprep.subr.mxu0 0.0
    %113 = vmatpush1.msra.mxu0 0.0
    %114 = vmatprep.subr.mxu0 0.0
    %115 = vmatpush1.msra.mxu0 0.0
    %116 = vmatprep.subr.mxu0 0.0
    %117 = vmatpush1.msra.mxu0 0.0
    %118 = vmatprep.subr.mxu0 0.0
    %119 = vmatpush1.msra.mxu0 0.0
    %120 = vmatprep.subr.mxu0 0.0
    %121 = vmatpush1.msra.mxu0 0.0
    %122 = vmatprep.subr.mxu0 0.0
    %123 = vmatpush1.msra.mxu0 0.0
    %124 = vmatprep.subr.mxu0 0.0
    %125 = vmatpush1.msra.mxu0 0.0
    %126 = vmatprep.subr.mxu0 0.0
    %127 = vmatpush1.msra.mxu0 0.0
    %128 = vmatprep.subr.mxu0 0.0
    %129 = vmatpush1.msra.mxu0 0.0
    %130 = vmatprep.subr.mxu0 0.0
    %131 = vmatpush1.msra.mxu0 0.0
    %132 = vmatprep.subr.mxu0 0.0
    %133 = vmatpush1.msra.mxu0 0.0
    %134 = vmatprep.subr.mxu0 0.0
    %135 = vmatpush1.msra.mxu0 0.0
    %136 = vmatprep.subr.mxu0 0.0
    %137 = vmatpush1.msra.mxu0 0.0
    %138 = vmatprep.subr.mxu0 0.0
    %139 = vmatpush1.msra.mxu0 0.0
    %140 = vmatprep.mubr.f32.mxu0 0.0
    %141 = vmatmul.mubr.f32.gmra.mrb[0].mxu0 %v58
    %v142 = vpop.f32.mrb[0].mxu0
    %v143 = vadd.f32 0.0, %v142
    %v144 = vpop.f32.mrb[0].mxu0
    %145 = vmatprep.mubr.f32.mxu0 0.0
    %146 = vmatmul.mubr.f32.gmra.mrb[0].mxu0 %v59
    %v147 = vpop.f32.mrb[0].mxu0
    %v148 = vadd.f32 0.0, %v147
    %v149 = vpop.f32.mrb[0].mxu0
    %150 = vdwg.mxu0
    %v151 = vadd.f32 %v56, %v143
    %v152 = vadd.f32 %v57, %v148
    %153 = vst [vmem:[#allocation7] sm:$0xff] %v151
    %154 = vst [vmem:[#allocation7 + $0x8] sm:$0xff] %v152
    // Predicated region
    $region26: #{tpu_custom_call.1} parent=1 // pred_check
      _
    $region27: #{tpu_custom_call.1} parent=1 // pred_check_branch
      %156 = sbr.rel (0) target = $region29
    $region28: #{tpu_custom_call.1} parent=1 // pred_region
      %s158 = ssub.s32 256, 256
      %159 = vsyncadd [#allocation4], %s158
      %s160 = sshll.u32 [#allocation7], 4
      %s161 = int_to_ptr.vmem [resolvable:$true] %s160
      %166 = dma.vmem_to_hbm [thread:$0]  %s161, 256, %s3, [#allocation4], 128, 128, 8
    $region29: #{tpu_custom_call.1} parent=1 // pred_fallthru
      _
    // Predicated region
    $region30: #{tpu_custom_call.1} parent=1 // pred_check
      _
    $region31: #{tpu_custom_call.1} parent=1 // pred_check_branch
      %168 = sbr.rel (0) target = $region33
    $region32: #{tpu_custom_call.1} parent=1 // pred_region
      %169 = dma.done [#allocation4], 256
    $region33: #{tpu_custom_call.1} parent=1 // pred_fallthru
      _
    %170 = vsyncpa [#allocation3], 1
    %171 = vsyncpa [#allocation6], 1
    %172 = vsyncpa [#allocation4], 1

</llo_original>
